<compile_context>
chip_gen: v6e
topology: v6e:2x2x1
jax: 0.10.0
libtpu: 0.0.40
codegen_flags: <defaults>
</compile_context>

<pallas_src>
import jax
import jax.numpy as jnp
from jax.experimental import pallas as pl
from jax.experimental.pallas import tpu as pltpu

NEG_SLOPE = 0.01  # torch.nn.LeakyReLU default negative_slope
LANE = 128


# ----------------------------- Pallas kernel ------------------------------ #
def _carefl_fused_kernel(x_ref, w1_ref, b1_ref, w2_ref, b2_ref,
                         wst_ref, bst_ref, z_ref, ld_ref):
    """All flows fused on a (D, tm) tile (batch in lanes).

    x_ref  : (D, tm)      transposed input rows
    w1_ref : (T, H, D)    W1^T per flow (pre-masked)
    b1_ref : (T, H, 1)
    w2_ref : (T, H, H)    W2^T per flow (pre-masked)
    b2_ref : (T, H, 1)
    wst_ref: (T, 2D, H)   [Ws; Wt]^T per flow (pre-masked)
    bst_ref: (T, 2D, 1)
    z_ref  : (D, tm)      transformed rows (transposed)
    ld_ref : (1, tm)      log|det| per row
    """
    num_flows = w1_ref.shape[0]
    D = z_ref.shape[0]

    z = x_ref[...].astype(jnp.float32)                 # (D, tm)
    s_acc = jnp.zeros_like(z)                          # (D, tm)

    for t in range(num_flows):                         # static unroll (small T)
        # masked linear 1 + LeakyReLU
        h = jnp.dot(w1_ref[t], z, preferred_element_type=jnp.float32) + b1_ref[t]
        h = jnp.maximum(h, NEG_SLOPE * h)
        # masked linear 2 + LeakyReLU
        h = jnp.dot(w2_ref[t], h, preferred_element_type=jnp.float32) + b2_ref[t]
        h = jnp.maximum(h, NEG_SLOPE * h)
        # fused output heads: one matmul -> [s; t] stacked along sublanes
        st = jnp.dot(wst_ref[t], h, preferred_element_type=jnp.float32) + bst_ref[t]
        s = st[:D]                                     # (D, tm) static slice
        tt = st[D:]                                    # (D, tm) static slice
        # affine autoregressive transform; defer the log-det reduce
        z = z * jnp.exp(s) + tt
        s_acc = s_acc + s

    z_ref[...] = z.astype(z_ref.dtype)
    ld_ref[...] = jnp.sum(s_acc, axis=0, keepdims=True)   # (1, tm), one XLU reduce


# ------------------------------ CAREFL forward ----------------------------- #
def carefl_forward(inputs, flows_params, *, tm=1024):
    """Mirrors CAREFL.forward with perm_mat=None (all flows fused in one call).

    Returns (z, log_dets) with z.shape == inputs.shape and
    log_dets.shape == inputs.shape[:-1].
    """
    assert flows_params, "need at least one flow"
    D = inputs.shape[-1]
    x2d = inputs.reshape(-1, D)
    N = x2d.shape[0]
    H = flows_params[0]["w1"].shape[1]
    T = len(flows_params)

    # Stack per-flow (pre-masked) parameters, transposed for the batch-in-lanes
    # layout, with the two output heads fused into one weight/bias.
    w1t = jnp.stack([p["w1"].T for p in flows_params], axis=0)            # (T, H, D)
    b1 = jnp.stack([p["b1"].reshape(H, 1) for p in flows_params], axis=0)  # (T, H, 1)
    w2t = jnp.stack([p["w2"].T for p in flows_params], axis=0)            # (T, H, H)
    b2 = jnp.stack([p["b2"].reshape(H, 1) for p in flows_params], axis=0)  # (T, H, 1)
    wstt = jnp.stack(
        [jnp.concatenate([p["ws"], p["wt"]], axis=-1).T for p in flows_params],
        axis=0)                                                           # (T, 2D, H)
    bst = jnp.stack(
        [jnp.concatenate([p["bs"], p["bt"]], axis=-1).reshape(2 * D, 1)
         for p in flows_params], axis=0)                                  # (T, 2D, 1)

    # Lane tiling of the (transposed) batch dimension.
    n_lane = pl.cdiv(max(N, 1), LANE) * LANE
    tm_eff = min(tm, n_lane)
    # Keep both v7x TensorCores busy: >= 2 parallel grid steps when possible.
    if n_lane >= 2 * LANE:
        tm_eff = min(tm_eff, n_lane // 2)
    # Hardware-friendly granularity: multiples of 256 fill full MXU column
    # groups on v6e/v7x; fall back to 128 (lane width) for small batches.
    gran = 256 if tm_eff >= 256 else LANE
    tm_eff = max(LANE, (tm_eff // gran) * gran)
    n_pad = pl.cdiv(n_lane, tm_eff) * tm_eff

    x_t = x2d.T                                        # (D, N)  batch in lanes
    if n_pad != N:
        x_t = jnp.pad(x_t, ((0, 0), (0, n_pad - N)))
    grid = (n_pad // tm_eff,)

    rep3 = lambda i: (0, 0, 0)  # weights: VMEM-resident across the row grid
    z_t_pad, ld_pad = pl.pallas_call(
        _carefl_fused_kernel,
        out_shape=(jax.ShapeDtypeStruct((D, n_pad), x2d.dtype),
                   jax.ShapeDtypeStruct((1, n_pad), jnp.float32)),
        grid=grid,
        in_specs=[
            pl.BlockSpec((D, tm_eff), lambda i: (0, i)),     # x^T rows (lane-dense)
            pl.BlockSpec((T, H, D), rep3),                   # W1^T stacked
            pl.BlockSpec((T, H, 1), rep3),                   # b1
            pl.BlockSpec((T, H, H), rep3),                   # W2^T
            pl.BlockSpec((T, H, 1), rep3),                   # b2
            pl.BlockSpec((T, 2 * D, H), rep3),               # [Ws; Wt]^T fused heads
            pl.BlockSpec((T, 2 * D, 1), rep3),               # [bs; bt]
        ],
        out_specs=(pl.BlockSpec((D, tm_eff), lambda i: (0, i)),
                   pl.BlockSpec((1, tm_eff), lambda i: (0, i))),
        compiler_params=pltpu.CompilerParams(
            dimension_semantics=("parallel",)),
    )(x_t, w1t, b1, w2t, b2, wstt, bst)

    z = z_t_pad[:, :N].T.reshape(inputs.shape)
    log_dets = ld_pad[0, :N].reshape(inputs.shape[:-1])
    return z, log_dets


# -------------------------- parameter construction ------------------------- #
def _made_masks(D, H, reversed_ordering=True):
    """MADE autoregressive masks for the flow ordering (default: reversed)."""
    in_deg = jnp.arange(D)[::-1] if reversed_ordering else jnp.arange(D)
    h_deg = jnp.arange(H) % max(D - 1, 1)
    out_deg = in_deg
    m1 = (h_deg[None, :] >= in_deg[:, None]).astype(jnp.float32)      # (D, H)
    m2 = (h_deg[None, :] >= h_deg[:, None]).astype(jnp.float32)       # (H, H)
    mo = (out_deg[None, :] > h_deg[:, None]).astype(jnp.float32)      # (H, D)
    return m1, m2, mo


def make_flow_params(key, D, H, reversed_ordering=True):
    """Deterministic synthetic weights for one MaskedAffineFlow (pre-masked)."""
    m1, m2, mo = _made_masks(D, H, reversed_ordering)
    k = jax.random.split(key, 8)
    scale = 0.1
    w1 = scale * jax.random.normal(k[0], (D, H), jnp.float32) * m1
    b1 = scale * jax.random.normal(k[1], (1, H), jnp.float32)
    w2 = scale * jax.random.normal(k[2], (H, H), jnp.float32) * m2
    b2 = scale * jax.random.normal(k[3], (1, H), jnp.float32)
    ws = scale * jax.random.normal(k[4], (H, D), jnp.float32) * mo
    bs = scale * jax.random.normal(k[5], (1, D), jnp.float32)
    wt = scale * jax.random.normal(k[6], (H, D), jnp.float32) * mo
    bt = scale * jax.random.normal(k[7], (1, D), jnp.float32)
    return dict(w1=w1, b1=b1, w2=w2, b2=b2, ws=ws, bs=bs, wt=wt, bt=bt)


# ----------------------------- pure-JAX reference --------------------------- #
def _reference_forward(inputs, flows_params):
    D = inputs.shape[-1]
    z = inputs.reshape(-1, D).astype(jnp.float32)
    ld = jnp.zeros((z.shape[0],), jnp.float32)
    for p in flows_params:
        h = z @ p["w1"] + p["b1"]
        h = jnp.where(h > 0, h, NEG_SLOPE * h)
        h = h @ p["w2"] + p["b2"]
        h = jnp.where(h > 0, h, NEG_SLOPE * h)
        s = h @ p["ws"] + p["bs"]
        t = h @ p["wt"] + p["bt"]
        z = z * jnp.exp(s) + t
        ld = ld + jnp.sum(s, axis=-1)
    return z.reshape(inputs.shape), ld.reshape(inputs.shape[:-1])


# ----------------------------------- main ---------------------------------- #
if __name__ == "__main__":
    D = 4              # in_features
    H = 32             # hidden width (layers=[32, 32])
    NUM_TRANSFORMS = 2
    BATCH, SEQ = 2, 8  # leading dims -> N = 16 flattened rows

    root = jax.random.PRNGKey(0)
    kx, *kflows = jax.random.split(root, 1 + NUM_TRANSFORMS)
    x = jax.random.normal(kx, (BATCH, SEQ, D), jnp.float32)
    flows_params = [make_flow_params(kf, D, H) for kf in kflows]

    z, log_dets = carefl_forward(x, flows_params)
    jax.block_until_ready((z, log_dets))

    assert z.shape == (BATCH, SEQ, D), z.shape
    assert log_dets.shape == (BATCH, SEQ), log_dets.shape
    assert bool(jnp.all(jnp.isfinite(z))) and bool(jnp.all(jnp.isfinite(log_dets)))

    z_ref, ld_ref = _reference_forward(x, flows_params)
    assert bool(jnp.allclose(z, z_ref, rtol=1e-5, atol=1e-5))
    assert bool(jnp.allclose(log_dets, ld_ref, rtol=1e-5, atol=1e-5))

    print("KERNEL_OK")
</pallas_src>

<mosaic_0001>
module attributes {stable_mosaic.version = 11 : i64} {
  func.func @_carefl_fused_kernel(%arg0: i32, %arg1: memref<4x128xf32, #tpu.memory_space<vmem>>, %arg2: memref<2x32x4xf32, #tpu.memory_space<vmem>>, %arg3: memref<2x32x1xf32, #tpu.memory_space<vmem>>, %arg4: memref<2x32x32xf32, #tpu.memory_space<vmem>>, %arg5: memref<2x32x1xf32, #tpu.memory_space<vmem>>, %arg6: memref<2x8x32xf32, #tpu.memory_space<vmem>>, %arg7: memref<2x8x1xf32, #tpu.memory_space<vmem>>, %arg8: memref<4x128xf32, #tpu.memory_space<vmem>>, %arg9: memref<1x128xf32, #tpu.memory_space<vmem>>) attributes {dimension_semantics = [#tpu.dimension_semantics<parallel>], iteration_bounds = array<i64: 1>, scalar_prefetch = 0 : i64, scratch_operands = 0 : i64, tpu.core_type = #tpu.core_type<tc>, window_params = [{transform_indices = @transform_0, window_bounds = array<i64: 4, 128>}, {pipeline_mode = #tpu.pipeline_mode<synchronous>, transform_indices = @transform_1, window_bounds = array<i64: 2, 32, 4>}, {pipeline_mode = #tpu.pipeline_mode<synchronous>, transform_indices = @transform_2, window_bounds = array<i64: 2, 32, 1>}, {pipeline_mode = #tpu.pipeline_mode<synchronous>, transform_indices = @transform_3, window_bounds = array<i64: 2, 32, 32>}, {pipeline_mode = #tpu.pipeline_mode<synchronous>, transform_indices = @transform_4, window_bounds = array<i64: 2, 32, 1>}, {pipeline_mode = #tpu.pipeline_mode<synchronous>, transform_indices = @transform_5, window_bounds = array<i64: 2, 8, 32>}, {pipeline_mode = #tpu.pipeline_mode<synchronous>, transform_indices = @transform_6, window_bounds = array<i64: 2, 8, 1>}, {transform_indices = @transform_7, window_bounds = array<i64: 4, 128>}, {transform_indices = @transform_8, window_bounds = array<i64: 1, 128>}]} {
    %c0 = arith.constant 0 : index
    %c0_0 = arith.constant 0 : index
    %0 = vector.load %arg1[%c0, %c0_0] : memref<4x128xf32, #tpu.memory_space<vmem>>, vector<4x128xf32>
    %cst = arith.constant 0.000000e+00 : f32
    %1 = vector.broadcast %cst : f32 to vector<4x128xf32>
    %c0_1 = arith.constant 0 : index
    %c0_2 = arith.constant 0 : index
    %c0_3 = arith.constant 0 : index
    %2 = vector.load %arg2[%c0_1, %c0_2, %c0_3] : memref<2x32x4xf32, #tpu.memory_space<vmem>>, vector<1x32x4xf32>
    %3 = vector.shape_cast %2 : vector<1x32x4xf32> to vector<32x4xf32>
    %cst_4 = arith.constant dense<0.000000e+00> : vector<32x128xf32>
    %4 = tpu.matmul %3, %0, %cst_4 {dimension_numbers = #tpu.dot_dimension_numbers<[1], [0], [0], [1], [0, 0, 1, 1], [], []>} : vector<32x4xf32>, vector<4x128xf32>, vector<32x128xf32> -> vector<32x128xf32>
    %c0_5 = arith.constant 0 : index
    %c0_6 = arith.constant 0 : index
    %c0_7 = arith.constant 0 : index
    %5 = vector.load %arg3[%c0_5, %c0_6, %c0_7] : memref<2x32x1xf32, #tpu.memory_space<vmem>>, vector<1x32x1xf32>
    %6 = vector.shape_cast %5 : vector<1x32x1xf32> to vector<32x1xf32>
    %7 = vector.broadcast %6 : vector<32x1xf32> to vector<32x128xf32>
    %8 = arith.addf %4, %7 : vector<32x128xf32>
    %cst_8 = arith.constant 0.00999999977 : f32
    %9 = vector.broadcast %cst_8 : f32 to vector<32x128xf32>
    %10 = arith.mulf %9, %8 : vector<32x128xf32>
    %11 = arith.maximumf %8, %10 : vector<32x128xf32>
    %c0_9 = arith.constant 0 : index
    %c0_10 = arith.constant 0 : index
    %c0_11 = arith.constant 0 : index
    %12 = vector.load %arg4[%c0_9, %c0_10, %c0_11] : memref<2x32x32xf32, #tpu.memory_space<vmem>>, vector<1x32x32xf32>
    %13 = vector.shape_cast %12 : vector<1x32x32xf32> to vector<32x32xf32>
    %cst_12 = arith.constant dense<0.000000e+00> : vector<32x128xf32>
    %14 = tpu.matmul %13, %11, %cst_12 {dimension_numbers = #tpu.dot_dimension_numbers<[1], [0], [0], [1], [0, 0, 1, 1], [], []>} : vector<32x32xf32>, vector<32x128xf32>, vector<32x128xf32> -> vector<32x128xf32>
    %c0_13 = arith.constant 0 : index
    %c0_14 = arith.constant 0 : index
    %c0_15 = arith.constant 0 : index
    %15 = vector.load %arg5[%c0_13, %c0_14, %c0_15] : memref<2x32x1xf32, #tpu.memory_space<vmem>>, vector<1x32x1xf32>
    %16 = vector.shape_cast %15 : vector<1x32x1xf32> to vector<32x1xf32>
    %17 = vector.broadcast %16 : vector<32x1xf32> to vector<32x128xf32>
    %18 = arith.addf %14, %17 : vector<32x128xf32>
    %cst_16 = arith.constant 0.00999999977 : f32
    %19 = vector.broadcast %cst_16 : f32 to vector<32x128xf32>
    %20 = arith.mulf %19, %18 : vector<32x128xf32>
    %21 = arith.maximumf %18, %20 : vector<32x128xf32>
    %c0_17 = arith.constant 0 : index
    %c0_18 = arith.constant 0 : index
    %c0_19 = arith.constant 0 : index
    %22 = vector.load %arg6[%c0_17, %c0_18, %c0_19] : memref<2x8x32xf32, #tpu.memory_space<vmem>>, vector<1x8x32xf32>
    %23 = vector.shape_cast %22 : vector<1x8x32xf32> to vector<8x32xf32>
    %cst_20 = arith.constant dense<0.000000e+00> : vector<8x128xf32>
    %24 = tpu.matmul %23, %21, %cst_20 {dimension_numbers = #tpu.dot_dimension_numbers<[1], [0], [0], [1], [0, 0, 1, 1], [], []>} : vector<8x32xf32>, vector<32x128xf32>, vector<8x128xf32> -> vector<8x128xf32>
    %c0_21 = arith.constant 0 : index
    %c0_22 = arith.constant 0 : index
    %c0_23 = arith.constant 0 : index
    %25 = vector.load %arg7[%c0_21, %c0_22, %c0_23] : memref<2x8x1xf32, #tpu.memory_space<vmem>>, vector<1x8x1xf32>
    %26 = vector.shape_cast %25 : vector<1x8x1xf32> to vector<8x1xf32>
    %27 = vector.broadcast %26 : vector<8x1xf32> to vector<8x128xf32>
    %28 = arith.addf %24, %27 : vector<8x128xf32>
    %29 = vector.extract_strided_slice %28 {offsets = [0, 0], sizes = [4, 128], strides = [1, 1]} : vector<8x128xf32> to vector<4x128xf32>
    %30 = vector.extract_strided_slice %28 {offsets = [4, 0], sizes = [4, 128], strides = [1, 1]} : vector<8x128xf32> to vector<4x128xf32>
    %31 = math.exp %29 : vector<4x128xf32>
    %32 = arith.mulf %0, %31 : vector<4x128xf32>
    %33 = arith.addf %32, %30 : vector<4x128xf32>
    %34 = arith.addf %1, %29 : vector<4x128xf32>
    %c1 = arith.constant 1 : index
    %c0_24 = arith.constant 0 : index
    %c0_25 = arith.constant 0 : index
    %35 = vector.load %arg2[%c1, %c0_24, %c0_25] : memref<2x32x4xf32, #tpu.memory_space<vmem>>, vector<1x32x4xf32>
    %36 = vector.shape_cast %35 : vector<1x32x4xf32> to vector<32x4xf32>
    %cst_26 = arith.constant dense<0.000000e+00> : vector<32x128xf32>
    %37 = tpu.matmul %36, %33, %cst_26 {dimension_numbers = #tpu.dot_dimension_numbers<[1], [0], [0], [1], [0, 0, 1, 1], [], []>} : vector<32x4xf32>, vector<4x128xf32>, vector<32x128xf32> -> vector<32x128xf32>
    %c1_27 = arith.constant 1 : index
    %c0_28 = arith.constant 0 : index
    %c0_29 = arith.constant 0 : index
    %38 = vector.load %arg3[%c1_27, %c0_28, %c0_29] : memref<2x32x1xf32, #tpu.memory_space<vmem>>, vector<1x32x1xf32>
    %39 = vector.shape_cast %38 : vector<1x32x1xf32> to vector<32x1xf32>
    %40 = vector.broadcast %39 : vector<32x1xf32> to vector<32x128xf32>
    %41 = arith.addf %37, %40 : vector<32x128xf32>
    %cst_30 = arith.constant 0.00999999977 : f32
    %42 = vector.broadcast %cst_30 : f32 to vector<32x128xf32>
    %43 = arith.mulf %42, %41 : vector<32x128xf32>
    %44 = arith.maximumf %41, %43 : vector<32x128xf32>
    %c1_31 = arith.constant 1 : index
    %c0_32 = arith.constant 0 : index
    %c0_33 = arith.constant 0 : index
    %45 = vector.load %arg4[%c1_31, %c0_32, %c0_33] : memref<2x32x32xf32, #tpu.memory_space<vmem>>, vector<1x32x32xf32>
    %46 = vector.shape_cast %45 : vector<1x32x32xf32> to vector<32x32xf32>
    %cst_34 = arith.constant dense<0.000000e+00> : vector<32x128xf32>
    %47 = tpu.matmul %46, %44, %cst_34 {dimension_numbers = #tpu.dot_dimension_numbers<[1], [0], [0], [1], [0, 0, 1, 1], [], []>} : vector<32x32xf32>, vector<32x128xf32>, vector<32x128xf32> -> vector<32x128xf32>
    %c1_35 = arith.constant 1 : index
    %c0_36 = arith.constant 0 : index
    %c0_37 = arith.constant 0 : index
    %48 = vector.load %arg5[%c1_35, %c0_36, %c0_37] : memref<2x32x1xf32, #tpu.memory_space<vmem>>, vector<1x32x1xf32>
    %49 = vector.shape_cast %48 : vector<1x32x1xf32> to vector<32x1xf32>
    %50 = vector.broadcast %49 : vector<32x1xf32> to vector<32x128xf32>
    %51 = arith.addf %47, %50 : vector<32x128xf32>
    %cst_38 = arith.constant 0.00999999977 : f32
    %52 = vector.broadcast %cst_38 : f32 to vector<32x128xf32>
    %53 = arith.mulf %52, %51 : vector<32x128xf32>
    %54 = arith.maximumf %51, %53 : vector<32x128xf32>
    %c1_39 = arith.constant 1 : index
    %c0_40 = arith.constant 0 : index
    %c0_41 = arith.constant 0 : index
    %55 = vector.load %arg6[%c1_39, %c0_40, %c0_41] : memref<2x8x32xf32, #tpu.memory_space<vmem>>, vector<1x8x32xf32>
    %56 = vector.shape_cast %55 : vector<1x8x32xf32> to vector<8x32xf32>
    %cst_42 = arith.constant dense<0.000000e+00> : vector<8x128xf32>
    %57 = tpu.matmul %56, %54, %cst_42 {dimension_numbers = #tpu.dot_dimension_numbers<[1], [0], [0], [1], [0, 0, 1, 1], [], []>} : vector<8x32xf32>, vector<32x128xf32>, vector<8x128xf32> -> vector<8x128xf32>
    %c1_43 = arith.constant 1 : index
    %c0_44 = arith.constant 0 : index
    %c0_45 = arith.constant 0 : index
    %58 = vector.load %arg7[%c1_43, %c0_44, %c0_45] : memref<2x8x1xf32, #tpu.memory_space<vmem>>, vector<1x8x1xf32>
    %59 = vector.shape_cast %58 : vector<1x8x1xf32> to vector<8x1xf32>
    %60 = vector.broadcast %59 : vector<8x1xf32> to vector<8x128xf32>
    %61 = arith.addf %57, %60 : vector<8x128xf32>
    %62 = vector.extract_strided_slice %61 {offsets = [0, 0], sizes = [4, 128], strides = [1, 1]} : vector<8x128xf32> to vector<4x128xf32>
    %63 = vector.extract_strided_slice %61 {offsets = [4, 0], sizes = [4, 128], strides = [1, 1]} : vector<8x128xf32> to vector<4x128xf32>
    %64 = math.exp %62 : vector<4x128xf32>
    %65 = arith.mulf %33, %64 : vector<4x128xf32>
    %66 = arith.addf %65, %63 : vector<4x128xf32>
    %67 = arith.addf %34, %62 : vector<4x128xf32>
    %c0_46 = arith.constant 0 : index
    %c0_47 = arith.constant 0 : index
    %68 = vector.load %arg8[%c0_46, %c0_47] : memref<4x128xf32, #tpu.memory_space<vmem>>, vector<4x128xf32>
    tpu.vector_store %arg8[%c0_46, %c0_47], %66 {strides = array<i32>} : memref<4x128xf32, #tpu.memory_space<vmem>>, vector<4x128xf32>,
    %cst_48 = arith.constant dense<0.000000e+00> : vector<128xf32>
    %69 = vector.multi_reduction <add>, %67, %cst_48 [0] : vector<4x128xf32> to vector<128xf32>
    %70 = vector.shape_cast %69 : vector<128xf32> to vector<1x128xf32>
    %c0_49 = arith.constant 0 : index
    %c0_50 = arith.constant 0 : index
    %71 = vector.load %arg9[%c0_49, %c0_50] : memref<1x128xf32, #tpu.memory_space<vmem>>, vector<1x128xf32>
    tpu.vector_store %arg9[%c0_49, %c0_50], %70 {strides = array<i32>} : memref<1x128xf32, #tpu.memory_space<vmem>>, vector<1x128xf32>,
    return
  }
  func.func @transform_0(%arg0: i32) -> (i32, i32) {
    %c0_i32 = arith.constant 0 : i32
    %c0_i32_0 = arith.constant 0 : i32
    return %c0_i32, %arg0 : i32, i32
  }
  func.func @transform_1(%arg0: i32) -> (i32, i32, i32) {
    %c0_i32 = arith.constant 0 : i32
    %c0_i32_0 = arith.constant 0 : i32
    %c0_i32_1 = arith.constant 0 : i32
    %c0_i32_2 = arith.constant 0 : i32
    return %c0_i32, %c0_i32_0, %c0_i32_1 : i32, i32, i32
  }
  func.func @transform_2(%arg0: i32) -> (i32, i32, i32) {
    %c0_i32 = arith.constant 0 : i32
    %c0_i32_0 = arith.constant 0 : i32
    %c0_i32_1 = arith.constant 0 : i32
    %c0_i32_2 = arith.constant 0 : i32
    return %c0_i32, %c0_i32_0, %c0_i32_1 : i32, i32, i32
  }
  func.func @transform_3(%arg0: i32) -> (i32, i32, i32) {
    %c0_i32 = arith.constant 0 : i32
    %c0_i32_0 = arith.constant 0 : i32
    %c0_i32_1 = arith.constant 0 : i32
    %c0_i32_2 = arith.constant 0 : i32
    return %c0_i32, %c0_i32_0, %c0_i32_1 : i32, i32, i32
  }
  func.func @transform_4(%arg0: i32) -> (i32, i32, i32) {
    %c0_i32 = arith.constant 0 : i32
    %c0_i32_0 = arith.constant 0 : i32
    %c0_i32_1 = arith.constant 0 : i32
    %c0_i32_2 = arith.constant 0 : i32
    return %c0_i32, %c0_i32_0, %c0_i32_1 : i32, i32, i32
  }
  func.func @transform_5(%arg0: i32) -> (i32, i32, i32) {
    %c0_i32 = arith.constant 0 : i32
    %c0_i32_0 = arith.constant 0 : i32
    %c0_i32_1 = arith.constant 0 : i32
    %c0_i32_2 = arith.constant 0 : i32
    return %c0_i32, %c0_i32_0, %c0_i32_1 : i32, i32, i32
  }
  func.func @transform_6(%arg0: i32) -> (i32, i32, i32) {
    %c0_i32 = arith.constant 0 : i32
    %c0_i32_0 = arith.constant 0 : i32
    %c0_i32_1 = arith.constant 0 : i32
    %c0_i32_2 = arith.constant 0 : i32
    return %c0_i32, %c0_i32_0, %c0_i32_1 : i32, i32, i32
  }
  func.func @transform_7(%arg0: i32) -> (i32, i32) {
    %c0_i32 = arith.constant 0 : i32
    %c0_i32_0 = arith.constant 0 : i32
    return %c0_i32, %arg0 : i32, i32
  }
  func.func @transform_8(%arg0: i32) -> (i32, i32) {
    %c0_i32 = arith.constant 0 : i32
    %c0_i32_0 = arith.constant 0 : i32
    return %c0_i32, %arg0 : i32, i32
  }
}

</mosaic_0001>

<llo_original>
// kernel: tpu_custom_call.1
$region0: #{tpu_custom_call.1}
  #allocation0 [shape = 'u32[]', space=smem, size = 0x4, offset = 0x4, fixed_abs, tag = 'smem constant byte address 0x4 - core index']
  #allocation1 [shape = 'u32[144,128]{1,0:T(1,128)}', space=vmem, size = 0x12000, scoped, tag = 'internal scratch']
  %s0 = inlined_call_operand.vmem [shape: f32[4,128], index: 0, kind: input, shape index: {}]
  %s1 = inlined_call_operand.vmem [shape: f32[2,32,4], index: 1, kind: input, shape index: {}]
  %s2 = inlined_call_operand.vmem [shape: f32[2,32,1], index: 2, kind: input, shape index: {}]
  %s3 = inlined_call_operand.vmem [shape: f32[2,32,32], index: 3, kind: input, shape index: {}]
  %s4 = inlined_call_operand.vmem [shape: f32[2,32,1], index: 4, kind: input, shape index: {}]
  %s5 = inlined_call_operand.vmem [shape: f32[2,8,32], index: 5, kind: input, shape index: {}]
  %s6 = inlined_call_operand.vmem [shape: f32[2,8,1], index: 6, kind: input, shape index: {}]
  %s7 = inlined_call_operand.hbm [shape: f32[4,128], index: 7, kind: output, shape index: {0}]
  %s8 = inlined_call_operand.hbm [shape: f32[1,128], index: 8, kind: output, shape index: {1}]
  %9 = xla_tuple %s7, %s8
  %s10 = sld [smem:[#allocation0]]
  $region46: #{tpu_custom_call.1} parent=0
    _
  %s12 = ssub.s32 1, %s10
  %s13 = scalar_select 0, %s12, %s10
  $region1: #{tpu_custom_call.1} parent=0
    #allocation2 [shape = 'u8[2048]{0}', space=vmem, size = 0x800, scoped, tag = 'output window, operand 0, single buffered']
    #allocation3 [shape = 's32[1]{0}', space=sflag, size = 0x4, scoped, tag = 'scoped memory for tpu_custom_call.1']
    #allocation4 [shape = 'u8[512]{0}', space=vmem, size = 0x400, scoped, tag = 'output window, operand 1, single buffered']
    #allocation5 [shape = 's32[1]{0}', space=sflag, size = 0x4, scoped, tag = 'scoped memory for tpu_custom_call.1']
    %14 = vsyncpa [#allocation3], 0
    %15 = vsyncpa [#allocation5], 0
    // Predicated region
    $region2: #{tpu_custom_call.1} parent=1 // pred_check
      _
    $region3: #{tpu_custom_call.1} parent=1 // pred_check_branch
      %17 = sbr.rel (0) target = $region5
    $region4: #{tpu_custom_call.1} parent=1 // pred_region
      _
    $region5: #{tpu_custom_call.1} parent=1 // pred_fallthru
      _
    // Predicated region
    $region6: #{tpu_custom_call.1} parent=1 // pred_check
      _
    $region7: #{tpu_custom_call.1} parent=1 // pred_check_branch
      %19 = sbr.rel (0) target = $region9
    $region8: #{tpu_custom_call.1} parent=1 // pred_region
      _
    $region9: #{tpu_custom_call.1} parent=1 // pred_fallthru
      _
    // Predicated region
    $region10: #{tpu_custom_call.1} parent=1 // pred_check
      _
    $region11: #{tpu_custom_call.1} parent=1 // pred_check_branch
      %21 = sbr.rel (0) target = $region13
    $region12: #{tpu_custom_call.1} parent=1 // pred_region
      _
    $region13: #{tpu_custom_call.1} parent=1 // pred_fallthru
      _
    // Predicated region
    $region14: #{tpu_custom_call.1} parent=1 // pred_check
      _
    $region15: #{tpu_custom_call.1} parent=1 // pred_check_branch
      %23 = sbr.rel (0) target = $region17
    $region16: #{tpu_custom_call.1} parent=1 // pred_region
      _
    $region17: #{tpu_custom_call.1} parent=1 // pred_fallthru
      _
    // Predicated region
    $region18: #{tpu_custom_call.1} parent=1 // pred_check
      _
    $region19: #{tpu_custom_call.1} parent=1 // pred_check_branch
      %25 = sbr.rel (0) target = $region21
    $region20: #{tpu_custom_call.1} parent=1 // pred_region
      _
    $region21: #{tpu_custom_call.1} parent=1 // pred_fallthru
      _
    // Predicated region
    $region22: #{tpu_custom_call.1} parent=1 // pred_check
      _
    $region23: #{tpu_custom_call.1} parent=1 // pred_check_branch
      %27 = sbr.rel (0) target = $region25
    $region24: #{tpu_custom_call.1} parent=1 // pred_region
      _
    $region25: #{tpu_custom_call.1} parent=1 // pred_fallthru
      _
    // Predicated region
    $region26: #{tpu_custom_call.1} parent=1 // pred_check
      _
    $region27: #{tpu_custom_call.1} parent=1 // pred_check_branch
      %29 = sbr.rel (0) target = $region29
    $region28: #{tpu_custom_call.1} parent=1 // pred_region
      _
    $region29: #{tpu_custom_call.1} parent=1 // pred_fallthru
      _
    %v30 = vld [vmem:[%s0] sm:$0xf]
    %v31 = vld [vmem:[%s1] sm:$0xff]
    %v32 = vld [vmem:[%s1 + $0x8] sm:$0xff]
    %v33 = vld [vmem:[%s1 + $0x10] sm:$0xff]
    %v34 = vld [vmem:[%s1 + $0x18] sm:$0xff]
    %v35 = vld [vmem:[%s2] sm:$0xff]
    %v36 = vld [vmem:[%s2 + $0x8] sm:$0xff]
    %v37 = vld [vmem:[%s2 + $0x10] sm:$0xff]
    %v38 = vld [vmem:[%s2 + $0x18] sm:$0xff]
    %40 = vset.pattern.permute.xlu0 0
    %41 = vperm.xlu0 %40, %v35
    %v42 = vpop.permute.xlu0 %41
    %45 = vset.pattern.permute.xlu0 0
    %46 = vperm.xlu0 %45, %v36
    %v47 = vpop.permute.xlu0 %46
    %50 = vset.pattern.permute.xlu0 0
    %51 = vperm.xlu0 %50, %v37
    %v52 = vpop.permute.xlu0 %51
    %55 = vset.pattern.permute.xlu0 0
    %56 = vperm.xlu0 %55, %v38
    %v57 = vpop.permute.xlu0 %56
    %vm59 = vcmask 31744
    %v61 = vsel %vm59, %v31, 0
    %v64 = vsel %vm59, %v32, 0
    %v67 = vsel %vm59, %v33, 0
    %v70 = vsel %vm59, %v34, 0
    %vm72 = vcmask 1043456
    %v74 = vsel %vm72, %v30, 0
    %76 = vmatprep.subr.mxu0 0.0
    %77 = vmatpush1.msra.mxu0 0.0
    %78 = vmatprep.subr.mxu0 0.0
    %79 = vmatpush1.msra.mxu0 0.0
    %80 = vmatprep.subr.mxu0 0.0
    %81 = vmatpush1.msra.mxu0 0.0
    %82 = vmatprep.subr.mxu0 0.0
    %83 = vmatpush1.msra.mxu0 0.0
    %84 = vmatprep.subr.mxu0 0.0
    %85 = vmatpush1.msra.mxu0 0.0
    %86 = vmatprep.subr.mxu0 0.0
    %87 = vmatpush1.msra.mxu0 0.0
    %88 = vmatprep.subr.mxu0 0.0
    %89 = vmatpush1.msra.mxu0 0.0
    %90 = vmatprep.subr.mxu0 0.0
    %91 = vmatpush1.msra.mxu0 0.0
    %92 = vmatprep.subr.mxu0 0.0
    %93 = vmatpush1.msra.mxu0 0.0
    %94 = vmatprep.subr.mxu0 0.0
    %95 = vmatpush1.msra.mxu0 0.0
    %96 = vmatprep.subr.mxu0 0.0
    %97 = vmatpush1.msra.mxu0 0.0
    %98 = vmatprep.subr.mxu0 0.0
    %99 = vmatpush1.msra.mxu0 0.0
    %100 = vmatprep.subr.mxu0 0.0
    %101 = vmatpush1.msra.mxu0 0.0
    %102 = vmatprep.subr.mxu0 0.0
    %103 = vmatpush1.msra.mxu0 0.0
    %104 = vmatprep.subr.mxu0 0.0
    %105 = vmatpush1.msra.mxu0 0.0
    %106 = vmatprep.subr.mxu0 0.0
    %107 = vmatpush1.msra.mxu0 %v74
    %108 = vmatprep.subr.mxu0 0.0
    %109 = vmatpush2.msra.mxu0 0.0
    %110 = vmatprep.subr.mxu0 0.0
    %111 = vmatpush2.msra.mxu0 0.0
    %112 = vmatprep.subr.mxu0 0.0
    %113 = vmatpush2.msra.mxu0 0.0
    %114 = vmatprep.subr.mxu0 0.0
    %115 = vmatpush2.msra.mxu0 0.0
    %116 = vmatprep.subr.mxu0 0.0
    %117 = vmatpush2.msra.mxu0 0.0
    %118 = vmatprep.subr.mxu0 0.0
    %119 = vmatpush2.msra.mxu0 0.0
    %120 = vmatprep.subr.mxu0 0.0
    %121 = vmatpush2.msra.mxu0 0.0
    %122 = vmatprep.subr.mxu0 0.0
    %123 = vmatpush2.msra.mxu0 0.0
    %124 = vmatprep.subr.mxu0 0.0
    %125 = vmatpush2.msra.mxu0 0.0
    %126 = vmatprep.subr.mxu0 0.0
    %127 = vmatpush2.msra.mxu0 0.0
    %128 = vmatprep.subr.mxu0 0.0
    %129 = vmatpush2.msra.mxu0 0.0
    %130 = vmatprep.subr.mxu0 0.0
    %131 = vmatpush2.msra.mxu0 0.0
    %132 = vmatprep.subr.mxu0 0.0
    %133 = vmatpush2.msra.mxu0 0.0
    %134 = vmatprep.subr.mxu0 0.0
    %135 = vmatpush2.msra.mxu0 0.0
    %136 = vmatprep.subr.mxu0 0.0
    %137 = vmatpush2.msra.mxu0 0.0
    %138 = vmatprep.subr.mxu0 0.0
    %139 = vmatpush2.msra.mxu0 0.0
    %140 = vmatprep.mubr.f32.mxu0 0.0
    %141 = vmatmul.mubr.f32.gmra.mxu0 %v61
    %v142 = vpop.f32.mrf.mxu0
    %v143 = vadd.f32 %v42, %v142
    %v144 = vpop.f32.mrf.mxu0
    %145 = vmatprep.mubr.f32.mxu0 0.0
    %146 = vmatmul.mubr.f32.gmra.mxu0 %v64
    %v147 = vpop.f32.mrf.mxu0
    %v148 = vadd.f32 %v47, %v147
    %v149 = vpop.f32.mrf.mxu0
    %150 = vmatprep.mubr.f32.mxu0 0.0
    %151 = vmatmul.mubr.f32.gmra.mxu0 %v67
    %v152 = vpop.f32.mrf.mxu0
    %v153 = vadd.f32 %v52, %v152
    %v154 = vpop.f32.mrf.mxu0
    %155 = vmatprep.mubr.f32.mxu0 0.0
    %156 = vmatmul.mubr.f32.gmra.mxu0 %v70
    %v157 = vpop.f32.mrf.mxu0
    %v158 = vadd.f32 %v57, %v157
    %v159 = vpop.f32.mrf.mxu0
    %160 = vdwg.mxu0
    %v161 = vmul.f32 %v143, 0.01
    %v162 = vmul.f32 %v148, 0.01
    %v163 = vmul.f32 %v153, 0.01
    %v164 = vmul.f32 %v158, 0.01
    %v165 = vmax.f32 %v143, %v161
    %v166 = vmax.f32 %v148, %v162
    %v167 = vmax.f32 %v153, %v163
    %v168 = vmax.f32 %v158, %v164
    %v169 = vld [vmem:[%s3] sm:$0xff]
    %v170 = vld [vmem:[%s3 + $0x8] sm:$0xff]
    %v171 = vld [vmem:[%s3 + $0x10] sm:$0xff]
    %v172 = vld [vmem:[%s3 + $0x18] sm:$0xff]
    %v173 = vld [vmem:[%s4] sm:$0xff]
    %v174 = vld [vmem:[%s4 + $0x8] sm:$0xff]
    %v175 = vld [vmem:[%s4 + $0x10] sm:$0xff]
    %v176 = vld [vmem:[%s4 + $0x18] sm:$0xff]
    %178 = vset.pattern.permute.xlu0 0
    %179 = vperm.xlu0 %178, %v173
    %v180 = vpop.permute.xlu0 %179
    %183 = vset.pattern.permute.xlu0 0
    %184 = vperm.xlu0 %183, %v174
    %v185 = vpop.permute.xlu0 %184
    %188 = vset.pattern.permute.xlu0 0
    %189 = vperm.xlu0 %188, %v175
    %v190 = vpop.permute.xlu0 %189
    %193 = vset.pattern.permute.xlu0 0
    %194 = vperm.xlu0 %193, %v176
    %v195 = vpop.permute.xlu0 %194
    %vm197 = vcmask 261120
    %v199 = vsel %vm197, %v169, 0
    %v202 = vsel %vm197, %v170, 0
    %v205 = vsel %vm197, %v171, 0
    %v208 = vsel %vm197, %v172, 0
    %210 = vmatprep.subr.mxu0 0.0
    %211 = vmatpush1.msra.mxu0 0.0
    %212 = vmatprep.subr.mxu0 0.0
    %213 = vmatpush1.msra.mxu0 0.0
    %214 = vmatprep.subr.mxu0 0.0
    %215 = vmatpush1.msra.mxu0 0.0
    %216 = vmatprep.subr.mxu0 0.0
    %217 = vmatpush1.msra.mxu0 0.0
    %218 = vmatprep.subr.mxu0 0.0
    %219 = vmatpush1.msra.mxu0 0.0
    %220 = vmatprep.subr.mxu0 0.0
    %221 = vmatpush1.msra.mxu0 0.0
    %222 = vmatprep.subr.mxu0 0.0
    %223 = vmatpush1.msra.mxu0 0.0
    %224 = vmatprep.subr.mxu0 0.0
    %225 = vmatpush1.msra.mxu0 0.0
    %226 = vmatprep.subr.mxu0 0.0
    %227 = vmatpush1.msra.mxu0 0.0
    %228 = vmatprep.subr.mxu0 0.0
    %229 = vmatpush1.msra.mxu0 0.0
    %230 = vmatprep.subr.mxu0 0.0
    %231 = vmatpush1.msra.mxu0 0.0
    %232 = vmatprep.subr.mxu0 0.0
    %233 = vmatpush1.msra.mxu0 0.0
    %234 = vmatprep.subr.mxu0 0.0
    %235 = vmatpush1.msra.mxu0 %v168
    %236 = vmatprep.subr.mxu0 0.0
    %237 = vmatpush1.msra.mxu0 %v167
    %238 = vmatprep.subr.mxu0 0.0
    %239 = vmatpush1.msra.mxu0 %v166
    %240 = vmatprep.subr.mxu0 0.0
    %241 = vmatpush1.msra.mxu0 %v165
    %242 = vmatprep.subr.mxu0 0.0
    %243 = vmatpush2.msra.mxu0 0.0
    %244 = vmatprep.subr.mxu0 0.0
    %245 = vmatpush2.msra.mxu0 0.0
    %246 = vmatprep.subr.mxu0 0.0
    %247 = vmatpush2.msra.mxu0 0.0
    %248 = vmatprep.subr.mxu0 0.0
    %249 = vmatpush2.msra.mxu0 0.0
    %250 = vmatprep.subr.mxu0 0.0
    %251 = vmatpush2.msra.mxu0 0.0
    %252 = vmatprep.subr.mxu0 0.0
    %253 = vmatpush2.msra.mxu0 0.0
    %254 = vmatprep.subr.mxu0 0.0
    %255 = vmatpush2.msra.mxu0 0.0
    %256 = vmatprep.subr.mxu0 0.0
    %257 = vmatpush2.msra.mxu0 0.0
    %258 = vmatprep.subr.mxu0 0.0
    %259 = vmatpush2.msra.mxu0 0.0
    %260 = vmatprep.subr.mxu0 0.0
    %261 = vmatpush2.msra.mxu0 0.0
    %262 = vmatprep.subr.mxu0 0.0
    %263 = vmatpush2.msra.mxu0 0.0
    %264 = vmatprep.subr.mxu0 0.0
    %265 = vmatpush2.msra.mxu0 0.0
    %266 = vmatprep.subr.mxu0 0.0
    %267 = vmatpush2.msra.mxu0 0.0
    %268 = vmatprep.subr.mxu0 0.0
    %269 = vmatpush2.msra.mxu0 0.0
    %270 = vmatprep.subr.mxu0 0.0
    %271 = vmatpush2.msra.mxu0 0.0
    %272 = vmatprep.subr.mxu0 0.0
    %273 = vmatpush2.msra.mxu0 0.0
    %274 = vmatprep.mubr.f32.mxu0 0.0
    %275 = vmatmul.mubr.f32.gmra.mxu0 %v199
    %v276 = vpop.f32.mrf.mxu0
    %v277 = vadd.f32 %v180, %v276
    %v278 = vpop.f32.mrf.mxu0
    %279 = vmatprep.mubr.f32.mxu0 0.0
    %280 = vmatmul.mubr.f32.gmra.mxu0 %v202
    %v281 = vpop.f32.mrf.mxu0
    %v282 = vadd.f32 %v185, %v281
    %v283 = vpop.f32.mrf.mxu0
    %284 = vmatprep.mubr.f32.mxu0 0.0
    %285 = vmatmul.mubr.f32.gmra.mxu0 %v205
    %v286 = vpop.f32.mrf.mxu0
    %v287 = vadd.f32 %v190, %v286
    %v288 = vpop.f32.mrf.mxu0
    %289 = vmatprep.mubr.f32.mxu0 0.0
    %290 = vmatmul.mubr.f32.gmra.mxu0 %v208
    %v291 = vpop.f32.mrf.mxu0
    %v292 = vadd.f32 %v195, %v291
    %v293 = vpop.f32.mrf.mxu0
    %294 = vdwg.mxu0
    %v295 = vmul.f32 %v277, 0.01
    %v296 = vmul.f32 %v282, 0.01
    %v297 = vmul.f32 %v287, 0.01
    %v298 = vmul.f32 %v292, 0.01
    %v299 = vmax.f32 %v277, %v295
    %v300 = vmax.f32 %v282, %v296
    %v301 = vmax.f32 %v287, %v297
    %v302 = vmax.f32 %v292, %v298
    %v303 = vld [vmem:[%s5] sm:$0xff]
    %v304 = vld [vmem:[%s6] sm:$0xff]
    %306 = vset.pattern.permute.xlu0 0
    %307 = vperm.xlu0 %306, %v304
    %v308 = vpop.permute.xlu0 %307
    %v311 = vsel %vm197, %v303, 0
    %313 = vmatprep.subr.mxu0 0.0
    %314 = vmatpush1.msra.mxu0 0.0
    %315 = vmatprep.subr.mxu0 0.0
    %316 = vmatpush1.msra.mxu0 0.0
    %317 = vmatprep.subr.mxu0 0.0
    %318 = vmatpush1.msra.mxu0 0.0
    %319 = vmatprep.subr.mxu0 0.0
    %320 = vmatpush1.msra.mxu0 0.0
    %321 = vmatprep.subr.mxu0 0.0
    %322 = vmatpush1.msra.mxu0 0.0
    %323 = vmatprep.subr.mxu0 0.0
    %324 = vmatpush1.msra.mxu0 0.0
    %325 = vmatprep.subr.mxu0 0.0
    %326 = vmatpush1.msra.mxu0 0.0
    %327 = vmatprep.subr.mxu0 0.0
    %328 = vmatpush1.msra.mxu0 0.0
    %329 = vmatprep.subr.mxu0 0.0
    %330 = vmatpush1.msra.mxu0 0.0
    %331 = vmatprep.subr.mxu0 0.0
    %332 = vmatpush1.msra.mxu0 0.0
    %333 = vmatprep.subr.mxu0 0.0
    %334 = vmatpush1.msra.mxu0 0.0
    %335 = vmatprep.subr.mxu0 0.0
    %336 = vmatpush1.msra.mxu0 0.0
    %337 = vmatprep.subr.mxu0 0.0
    %338 = vmatpush1.msra.mxu0 %v302
    %339 = vmatprep.subr.mxu0 0.0
    %340 = vmatpush1.msra.mxu0 %v301
    %341 = vmatprep.subr.mxu0 0.0
    %342 = vmatpush1.msra.mxu0 %v300
    %343 = vmatprep.subr.mxu0 0.0
    %344 = vmatpush1.msra.mxu0 %v299
    %345 = vmatprep.subr.mxu0 0.0
    %346 = vmatpush2.msra.mxu0 0.0
    %347 = vmatprep.subr.mxu0 0.0
    %348 = vmatpush2.msra.mxu0 0.0
    %349 = vmatprep.subr.mxu0 0.0
    %350 = vmatpush2.msra.mxu0 0.0
    %351 = vmatprep.subr.mxu0 0.0
    %352 = vmatpush2.msra.mxu0 0.0
    %353 = vmatprep.subr.mxu0 0.0
    %354 = vmatpush2.msra.mxu0 0.0
    %355 = vmatprep.subr.mxu0 0.0
    %356 = vmatpush2.msra.mxu0 0.0
    %357 = vmatprep.subr.mxu0 0.0
    %358 = vmatpush2.msra.mxu0 0.0
    %359 = vmatprep.subr.mxu0 0.0
    %360 = vmatpush2.msra.mxu0 0.0
    %361 = vmatprep.subr.mxu0 0.0
    %362 = vmatpush2.msra.mxu0 0.0
    %363 = vmatprep.subr.mxu0 0.0
    %364 = vmatpush2.msra.mxu0 0.0
    %365 = vmatprep.subr.mxu0 0.0
    %366 = vmatpush2.msra.mxu0 0.0
    %367 = vmatprep.subr.mxu0 0.0
    %368 = vmatpush2.msra.mxu0 0.0
    %369 = vmatprep.subr.mxu0 0.0
    %370 = vmatpush2.msra.mxu0 0.0
    %371 = vmatprep.subr.mxu0 0.0
    %372 = vmatpush2.msra.mxu0 0.0
    %373 = vmatprep.subr.mxu0 0.0
    %374 = vmatpush2.msra.mxu0 0.0
    %375 = vmatprep.subr.mxu0 0.0
    %376 = vmatpush2.msra.mxu0 0.0
    %377 = vmatprep.mubr.f32.mxu0 0.0
    %378 = vmatmul.mubr.f32.gmra.mxu0 %v311
    %v379 = vpop.f32.mrf.mxu0
    %v380 = vadd.f32 %v308, %v379
    %v381 = vpop.f32.mrf.mxu0
    %382 = vdwg.mxu0
    %v383 = vmul.f32 %v380, 1.442695
    %v384 = vpow.pop %v383
    %v385 = vmul.f32 %v30, %v384
    %v387 = vrot.slane %v380, 4
    %v389 = vadd.f32 %v385, %v387
    %v390 = vadd.f32 %v380, 0.0
    %s391 = scalar_lea.vmem %s1, 32
    %v392 = vld [vmem:[%s391] sm:$0xff]
    %v393 = vld [vmem:[%s391 + $0x8] sm:$0xff]
    %v394 = vld [vmem:[%s391 + $0x10] sm:$0xff]
    %v395 = vld [vmem:[%s391 + $0x18] sm:$0xff]
    %s396 = scalar_lea.vmem %s2, 32
    %v397 = vld [vmem:[%s396] sm:$0xff]
    %v398 = vld [vmem:[%s396 + $0x8] sm:$0xff]
    %v399 = vld [vmem:[%s396 + $0x10] sm:$0xff]
    %v400 = vld [vmem:[%s396 + $0x18] sm:$0xff]
    %402 = vset.pattern.permute.xlu0 0
    %403 = vperm.xlu0 %402, %v397
    %v404 = vpop.permute.xlu0 %403
    %407 = vset.pattern.permute.xlu0 0
    %408 = vperm.xlu0 %407, %v398
    %v409 = vpop.permute.xlu0 %408
    %412 = vset.pattern.permute.xlu0 0
    %413 = vperm.xlu0 %412, %v399
    %v414 = vpop.permute.xlu0 %413
    %417 = vset.pattern.permute.xlu0 0
    %418 = vperm.xlu0 %417, %v400
    %v419 = vpop.permute.xlu0 %418
    %v422 = vsel %vm59, %v392, 0
    %v425 = vsel %vm59, %v393, 0
    %v428 = vsel %vm59, %v394, 0
    %v431 = vsel %vm59, %v395, 0
    %v434 = vsel %vm72, %v389, 0
    %436 = vmatprep.subr.mxu0 0.0
    %437 = vmatpush1.msra.mxu0 0.0
    %438 = vmatprep.subr.mxu0 0.0
    %439 = vmatpush1.msra.mxu0 0.0
    %440 = vmatprep.subr.mxu0 0.0
    %441 = vmatpush1.msra.mxu0 0.0
    %442 = vmatprep.subr.mxu0 0.0
    %443 = vmatpush1.msra.mxu0 0.0
    %444 = vmatprep.subr.mxu0 0.0
    %445 = vmatpush1.msra.mxu0 0.0
    %446 = vmatprep.subr.mxu0 0.0
    %447 = vmatpush1.msra.mxu0 0.0
    %448 = vmatprep.subr.mxu0 0.0
    %449 = vmatpush1.msra.mxu0 0.0
    %450 = vmatprep.subr.mxu0 0.0
    %451 = vmatpush1.msra.mxu0 0.0
    %452 = vmatprep.subr.mxu0 0.0
    %453 = vmatpush1.msra.mxu0 0.0
    %454 = vmatprep.subr.mxu0 0.0
    %455 = vmatpush1.msra.mxu0 0.0
    %456 = vmatprep.subr.mxu0 0.0
    %457 = vmatpush1.msra.mxu0 0.0
    %458 = vmatprep.subr.mxu0 0.0
    %459 = vmatpush1.msra.mxu0 0.0
    %460 = vmatprep.subr.mxu0 0.0
    %461 = vmatpush1.msra.mxu0 0.0
    %462 = vmatprep.subr.mxu0 0.0
    %463 = vmatpush1.msra.mxu0 0.0
    %464 = vmatprep.subr.mxu0 0.0
    %465 = vmatpush1.msra.mxu0 0.0
    %466 = vmatprep.subr.mxu0 0.0
    %467 = vmatpush1.msra.mxu0 %v434
    %468 = vmatprep.subr.mxu0 0.0
    %469 = vmatpush2.msra.mxu0 0.0
    %470 = vmatprep.subr.mxu0 0.0
    %471 = vmatpush2.msra.mxu0 0.0
    %472 = vmatprep.subr.mxu0 0.0
    %473 = vmatpush2.msra.mxu0 0.0
    %474 = vmatprep.subr.mxu0 0.0
    %475 = vmatpush2.msra.mxu0 0.0
    %476 = vmatprep.subr.mxu0 0.0
    %477 = vmatpush2.msra.mxu0 0.0
    %478 = vmatprep.subr.mxu0 0.0
    %479 = vmatpush2.msra.mxu0 0.0
    %480 = vmatprep.subr.mxu0 0.0
    %481 = vmatpush2.msra.mxu0 0.0
    %482 = vmatprep.subr.mxu0 0.0
    %483 = vmatpush2.msra.mxu0 0.0
    %484 = vmatprep.subr.mxu0 0.0
    %485 = vmatpush2.msra.mxu0 0.0
    %486 = vmatprep.subr.mxu0 0.0
    %487 = vmatpush2.msra.mxu0 0.0
    %488 = vmatprep.subr.mxu0 0.0
    %489 = vmatpush2.msra.mxu0 0.0
    %490 = vmatprep.subr.mxu0 0.0
    %491 = vmatpush2.msra.mxu0 0.0
    %492 = vmatprep.subr.mxu0 0.0
    %493 = vmatpush2.msra.mxu0 0.0
    %494 = vmatprep.subr.mxu0 0.0
    %495 = vmatpush2.msra.mxu0 0.0
    %496 = vmatprep.subr.mxu0 0.0
    %497 = vmatpush2.msra.mxu0 0.0
    %498 = vmatprep.subr.mxu0 0.0
    %499 = vmatpush2.msra.mxu0 0.0
    %500 = vmatprep.mubr.f32.mxu0 0.0
    %501 = vmatmul.mubr.f32.gmra.mxu0 %v422
    %v502 = vpop.f32.mrf.mxu0
    %v503 = vadd.f32 %v404, %v502
    %v504 = vpop.f32.mrf.mxu0
    %505 = vmatprep.mubr.f32.mxu0 0.0
    %506 = vmatmul.mubr.f32.gmra.mxu0 %v425
    %v507 = vpop.f32.mrf.mxu0
    %v508 = vadd.f32 %v409, %v507
    %v509 = vpop.f32.mrf.mxu0
    %510 = vmatprep.mubr.f32.mxu0 0.0
    %511 = vmatmul.mubr.f32.gmra.mxu0 %v428
    %v512 = vpop.f32.mrf.mxu0
    %v513 = vadd.f32 %v414, %v512
    %v514 = vpop.f32.mrf.mxu0
    %515 = vmatprep.mubr.f32.mxu0 0.0
    %516 = vmatmul.mubr.f32.gmra.mxu0 %v431
    %v517 = vpop.f32.mrf.mxu0
    %v518 = vadd.f32 %v419, %v517
    %v519 = vpop.f32.mrf.mxu0
    %520 = vdwg.mxu0
    %v521 = vmul.f32 %v503, 0.01
    %v522 = vmul.f32 %v508, 0.01
    %v523 = vmul.f32 %v513, 0.01
    %v524 = vmul.f32 %v518, 0.01
    %v525 = vmax.f32 %v503, %v521
    %v526 = vmax.f32 %v508, %v522
    %v527 = vmax.f32 %v513, %v523
    %v528 = vmax.f32 %v518, %v524
    %s529 = scalar_lea.vmem %s3, 32
    %v530 = vld [vmem:[%s529] sm:$0xff]
    %v531 = vld [vmem:[%s529 + $0x8] sm:$0xff]
    %v532 = vld [vmem:[%s529 + $0x10] sm:$0xff]
    %v533 = vld [vmem:[%s529 + $0x18] sm:$0xff]
    %s534 = scalar_lea.vmem %s4, 32
    %v535 = vld [vmem:[%s534] sm:$0xff]
    %v536 = vld [vmem:[%s534 + $0x8] sm:$0xff]
    %v537 = vld [vmem:[%s534 + $0x10] sm:$0xff]
    %v538 = vld [vmem:[%s534 + $0x18] sm:$0xff]
    %540 = vset.pattern.permute.xlu0 0
    %541 = vperm.xlu0 %540, %v535
    %v542 = vpop.permute.xlu0 %541
    %545 = vset.pattern.permute.xlu0 0
    %546 = vperm.xlu0 %545, %v536
    %v547 = vpop.permute.xlu0 %546
    %550 = vset.pattern.permute.xlu0 0
    %551 = vperm.xlu0 %550, %v537
    %v552 = vpop.permute.xlu0 %551
    %555 = vset.pattern.permute.xlu0 0
    %556 = vperm.xlu0 %555, %v538
    %v557 = vpop.permute.xlu0 %556
    %v560 = vsel %vm197, %v530, 0
    %v563 = vsel %vm197, %v531, 0
    %v566 = vsel %vm197, %v532, 0
    %v569 = vsel %vm197, %v533, 0
    %571 = vmatprep.subr.mxu0 0.0
    %572 = vmatpush1.msra.mxu0 0.0
    %573 = vmatprep.subr.mxu0 0.0
    %574 = vmatpush1.msra.mxu0 0.0
    %575 = vmatprep.subr.mxu0 0.0
    %576 = vmatpush1.msra.mxu0 0.0
    %577 = vmatprep.subr.mxu0 0.0
    %578 = vmatpush1.msra.mxu0 0.0
    %579 = vmatprep.subr.mxu0 0.0
    %580 = vmatpush1.msra.mxu0 0.0
    %581 = vmatprep.subr.mxu0 0.0
    %582 = vmatpush1.msra.mxu0 0.0
    %583 = vmatprep.subr.mxu0 0.0
    %584 = vmatpush1.msra.mxu0 0.0
    %585 = vmatprep.subr.mxu0 0.0
    %586 = vmatpush1.msra.mxu0 0.0
    %587 = vmatprep.subr.mxu0 0.0
    %588 = vmatpush1.msra.mxu0 0.0
    %589 = vmatprep.subr.mxu0 0.0
    %590 = vmatpush1.msra.mxu0 0.0
    %591 = vmatprep.subr.mxu0 0.0
    %592 = vmatpush1.msra.mxu0 0.0
    %593 = vmatprep.subr.mxu0 0.0
    %594 = vmatpush1.msra.mxu0 0.0
    %595 = vmatprep.subr.mxu0 0.0
    %596 = vmatpush1.msra.mxu0 %v528
    %597 = vmatprep.subr.mxu0 0.0
    %598 = vmatpush1.msra.mxu0 %v527
    %599 = vmatprep.subr.mxu0 0.0
    %600 = vmatpush1.msra.mxu0 %v526
    %601 = vmatprep.subr.mxu0 0.0
    %602 = vmatpush1.msra.mxu0 %v525
    %603 = vmatprep.subr.mxu0 0.0
    %604 = vmatpush2.msra.mxu0 0.0
    %605 = vmatprep.subr.mxu0 0.0
    %606 = vmatpush2.msra.mxu0 0.0
    %607 = vmatprep.subr.mxu0 0.0
    %608 = vmatpush2.msra.mxu0 0.0
    %609 = vmatprep.subr.mxu0 0.0
    %610 = vmatpush2.msra.mxu0 0.0
    %611 = vmatprep.subr.mxu0 0.0
    %612 = vmatpush2.msra.mxu0 0.0
    %613 = vmatprep.subr.mxu0 0.0
    %614 = vmatpush2.msra.mxu0 0.0
    %615 = vmatprep.subr.mxu0 0.0
    %616 = vmatpush2.msra.mxu0 0.0
    %617 = vmatprep.subr.mxu0 0.0
    %618 = vmatpush2.msra.mxu0 0.0
    %619 = vmatprep.subr.mxu0 0.0
    %620 = vmatpush2.msra.mxu0 0.0
    %621 = vmatprep.subr.mxu0 0.0
    %622 = vmatpush2.msra.mxu0 0.0
    %623 = vmatprep.subr.mxu0 0.0
    %624 = vmatpush2.msra.mxu0 0.0
    %625 = vmatprep.subr.mxu0 0.0
    %626 = vmatpush2.msra.mxu0 0.0
    %627 = vmatprep.subr.mxu0 0.0
    %628 = vmatpush2.msra.mxu0 0.0
    %629 = vmatprep.subr.mxu0 0.0
    %630 = vmatpush2.msra.mxu0 0.0
    %631 = vmatprep.subr.mxu0 0.0
    %632 = vmatpush2.msra.mxu0 0.0
    %633 = vmatprep.subr.mxu0 0.0
    %634 = vmatpush2.msra.mxu0 0.0
    %635 = vmatprep.mubr.f32.mxu0 0.0
    %636 = vmatmul.mubr.f32.gmra.mxu0 %v560
    %v637 = vpop.f32.mrf.mxu0
    %v638 = vadd.f32 %v542, %v637
    %v639 = vpop.f32.mrf.mxu0
    %640 = vmatprep.mubr.f32.mxu0 0.0
    %641 = vmatmul.mubr.f32.gmra.mxu0 %v563
    %v642 = vpop.f32.mrf.mxu0
    %v643 = vadd.f32 %v547, %v642
    %v644 = vpop.f32.mrf.mxu0
    %645 = vmatprep.mubr.f32.mxu0 0.0
    %646 = vmatmul.mubr.f32.gmra.mxu0 %v566
    %v647 = vpop.f32.mrf.mxu0
    %v648 = vadd.f32 %v552, %v647
    %v649 = vpop.f32.mrf.mxu0
    %650 = vmatprep.mubr.f32.mxu0 0.0
    %651 = vmatmul.mubr.f32.gmra.mxu0 %v569
    %v652 = vpop.f32.mrf.mxu0
    %v653 = vadd.f32 %v557, %v652
    %v654 = vpop.f32.mrf.mxu0
    %655 = vdwg.mxu0
    %v656 = vmul.f32 %v638, 0.01
    %v657 = vmul.f32 %v643, 0.01
    %v658 = vmul.f32 %v648, 0.01
    %v659 = vmul.f32 %v653, 0.01
    %v660 = vmax.f32 %v638, %v656
    %v661 = vmax.f32 %v643, %v657
    %v662 = vmax.f32 %v648, %v658
    %v663 = vmax.f32 %v653, %v659
    %s664 = scalar_lea.vmem %s5, 8
    %v665 = vld [vmem:[%s664] sm:$0xff]
    %s666 = scalar_lea.vmem %s6, 8
    %v667 = vld [vmem:[%s666] sm:$0xff]
    %669 = vset.pattern.permute.xlu0 0
    %670 = vperm.xlu0 %669, %v667
    %v671 = vpop.permute.xlu0 %670
    %v674 = vsel %vm197, %v665, 0
    %676 = vmatprep.subr.mxu0 0.0
    %677 = vmatpush1.msra.mxu0 0.0
    %678 = vmatprep.subr.mxu0 0.0
    %679 = vmatpush1.msra.mxu0 0.0
    %680 = vmatprep.subr.mxu0 0.0
    %681 = vmatpush1.msra.mxu0 0.0
    %682 = vmatprep.subr.mxu0 0.0
    %683 = vmatpush1.msra.mxu0 0.0
    %684 = vmatprep.subr.mxu0 0.0
    %685 = vmatpush1.msra.mxu0 0.0
    %686 = vmatprep.subr.mxu0 0.0
    %687 = vmatpush1.msra.mxu0 0.0
    %688 = vmatprep.subr.mxu0 0.0
    %689 = vmatpush1.msra.mxu0 0.0
    %690 = vmatprep.subr.mxu0 0.0
    %691 = vmatpush1.msra.mxu0 0.0
    %692 = vmatprep.subr.mxu0 0.0
    %693 = vmatpush1.msra.mxu0 0.0
    %694 = vmatprep.subr.mxu0 0.0
    %695 = vmatpush1.msra.mxu0 0.0
    %696 = vmatprep.subr.mxu0 0.0
    %697 = vmatpush1.msra.mxu0 0.0
    %698 = vmatprep.subr.mxu0 0.0
    %699 = vmatpush1.msra.mxu0 0.0
    %700 = vmatprep.subr.mxu0 0.0
    %701 = vmatpush1.msra.mxu0 %v663
    %702 = vmatprep.subr.mxu0 0.0
    %703 = vmatpush1.msra.mxu0 %v662
    %704 = vmatprep.subr.mxu0 0.0
    %705 = vmatpush1.msra.mxu0 %v661
    %706 = vmatprep.subr.mxu0 0.0
    %707 = vmatpush1.msra.mxu0 %v660
    %708 = vmatprep.subr.mxu0 0.0
    %709 = vmatpush2.msra.mxu0 0.0
    %710 = vmatprep.subr.mxu0 0.0
    %711 = vmatpush2.msra.mxu0 0.0
    %712 = vmatprep.subr.mxu0 0.0
    %713 = vmatpush2.msra.mxu0 0.0
    %714 = vmatprep.subr.mxu0 0.0
    %715 = vmatpush2.msra.mxu0 0.0
    %716 = vmatprep.subr.mxu0 0.0
    %717 = vmatpush2.msra.mxu0 0.0
    %718 = vmatprep.subr.mxu0 0.0
    %719 = vmatpush2.msra.mxu0 0.0
    %720 = vmatprep.subr.mxu0 0.0
    %721 = vmatpush2.msra.mxu0 0.0
    %722 = vmatprep.subr.mxu0 0.0
    %723 = vmatpush2.msra.mxu0 0.0
    %724 = vmatprep.subr.mxu0 0.0
    %725 = vmatpush2.msra.mxu0 0.0
    %726 = vmatprep.subr.mxu0 0.0
    %727 = vmatpush2.msra.mxu0 0.0
    %728 = vmatprep.subr.mxu0 0.0
    %729 = vmatpush2.msra.mxu0 0.0
    %730 = vmatprep.subr.mxu0 0.0
    %731 = vmatpush2.msra.mxu0 0.0
    %732 = vmatprep.subr.mxu0 0.0
    %733 = vmatpush2.msra.mxu0 0.0
    %734 = vmatprep.subr.mxu0 0.0
    %735 = vmatpush2.msra.mxu0 0.0
    %736 = vmatprep.subr.mxu0 0.0
    %737 = vmatpush2.msra.mxu0 0.0
    %738 = vmatprep.subr.mxu0 0.0
    %739 = vmatpush2.msra.mxu0 0.0
    %740 = vmatprep.mubr.f32.mxu0 0.0
    %741 = vmatmul.mubr.f32.gmra.mxu0 %v674
    %v742 = vpop.f32.mrf.mxu0
    %v743 = vadd.f32 %v671, %v742
    %v744 = vpop.f32.mrf.mxu0
    %745 = vdwg.mxu0
    %v746 = vmul.f32 %v743, 1.442695
    %v747 = vpow.pop %v746
    %v748 = vmul.f32 %v389, %v747
    %v750 = vrot.slane %v743, 4
    %v752 = vadd.f32 %v748, %v750
    %v753 = vadd.f32 %v390, %v743
    %754 = vst [vmem:[#allocation2] sm:$0xf] %v752
    %v755 = vsel %vm72, %v753, 0.0
    %v756 = vrot.slane %v755, 4
    %v757 = vadd.f32 %v755, %v756
    %v758 = vrot.slane %v757, 2
    %v759 = vadd.f32 %v757, %v758
    %v760 = vrot.slane %v759, 1
    %v761 = vadd.f32 %v759, %v760
    %762 = vst [vmem:[#allocation4] sm:$0x1] %v761
    // Predicated region
    $region30: #{tpu_custom_call.1} parent=1 // pred_check
      _
    $region31: #{tpu_custom_call.1} parent=1 // pred_check_branch
      %764 = sbr.rel (0) target = $region33
    $region32: #{tpu_custom_call.1} parent=1 // pred_region
      %s766 = ssub.s32 64, 64
      %767 = vsyncadd [#allocation3], %s766
      %s769 = sshll.u32 [#allocation2], 4
      %s770 = int_to_ptr.vmem [resolvable:$true] %s769
      %772 = dma.vmem_to_hbm [thread:$0]  %s770, 64, %s7, [#allocation3]
    $region33: #{tpu_custom_call.1} parent=1 // pred_fallthru
      _
    // Predicated region
    $region34: #{tpu_custom_call.1} parent=1 // pred_check
      _
    $region35: #{tpu_custom_call.1} parent=1 // pred_check_branch
      %774 = sbr.rel (0) target = $region37
    $region36: #{tpu_custom_call.1} parent=1 // pred_region
      %s776 = ssub.s32 16, 16
      %777 = vsyncadd [#allocation5], %s776
      %s779 = sshll.u32 [#allocation4], 4
      %s780 = int_to_ptr.vmem [resolvable:$true] %s779
      %782 = dma.vmem_to_hbm [thread:$0]  %s780, 16, %s8, [#allocation5]
    $region37: #{tpu_custom_call.1} parent=1 // pred_fallthru
      _
    // Predicated region
    $region38: #{tpu_custom_call.1} parent=1 // pred_check
      _
    $region39: #{tpu_custom_call.1} parent=1 // pred_check_branch
      %784 = sbr.rel (0) target = $region41
    $region40: #{tpu_custom_call.1} parent=1 // pred_region
      %785 = dma.done [#allocation3], 64
    $region41: #{tpu_custom_call.1} parent=1 // pred_fallthru
      _
    // Predicated region
    $region42: #{tpu_custom_call.1} parent=1 // pred_check
      _
    $region43: #{tpu_custom_call.1} parent=1 // pred_check_branch
      %787 = sbr.rel (0) target = $region45
    $region44: #{tpu_custom_call.1} parent=1 // pred_region
      %788 = dma.done [#allocation5], 16
    $region45: #{tpu_custom_call.1} parent=1 // pred_fallthru
      _
    %789 = vsyncpa [#allocation3], 1
    %790 = vsyncpa [#allocation5], 1

</llo_original>
